<compile_context>
chip_gen: v7x
topology: tpu7x:2x2x1
jax: 0.10.0
libtpu: 0.0.40
codegen_flags: <defaults>
</compile_context>

<pallas_src>
import functools
import math

import jax
import jax.numpy as jnp
from jax.experimental import pallas as pl
from jax.experimental.pallas import tpu as pltpu


def _round_up(x, m):
    return (x + m - 1) // m * m


def _physical_vmem_bytes():
    try:
        return int(pltpu.get_tpu_info().vmem_capacity_bytes)
    except Exception:
        return 64 * 1024 * 1024  # conservative fallback (v7x per-TC VMEM)


# ---------------------------------------------------------------------------
# Path A: small vocab -> VMEM-resident LUT + one-hot MXU-matmul gather.
# ---------------------------------------------------------------------------
def _onehot_embed_kernel(ids_ref, lut_ref, out_ref, *, vocab, scale):
    tile_tokens = out_ref.shape[0]
    ids = ids_ref[...]                                              # (T,1) i32
    col = jax.lax.broadcasted_iota(jnp.int32, (tile_tokens, vocab), 1)
    lut = lut_ref[...]                                              # native dtype
    # One-hot with value 1.0 in the LUT's native dtype: bf16 LUT -> full-rate
    # bf16 MXU; f32 LUT -> exact (each output sums a single nonzero product).
    onehot = jnp.where(col == ids, jnp.array(1, lut.dtype), jnp.array(0, lut.dtype))
    acc = jnp.dot(onehot, lut, preferred_element_type=jnp.float32)
    # sqrt(d_model) applied once on the (T, dm_pad) f32 result (VPU).
    out_ref[...] = (acc * jnp.float32(scale)).astype(out_ref.dtype)


# ---------------------------------------------------------------------------
# Path B: large vocab -> HBM LUT + batched per-row DMA gather, double-buffered
# across grid steps (tile i+1 streams while tile i is scaled + stored).
# ---------------------------------------------------------------------------
def _gather_embed_kernel(ids_ref, lut_hbm, out_ref, gbuf, sem, *,
                         tile_tokens, scale):
    i = pl.program_id(0)
    n_tiles = pl.num_programs(0)

    def issue_tile(tile_idx, slot):
        base = pl.multiple_of(tile_idx * tile_tokens, tile_tokens)

        def body(t, carry):
            row = ids_ref[base + t]
            pltpu.make_async_copy(
                lut_hbm.at[pl.ds(row, 1)],
                gbuf.at[slot, pl.ds(t, 1)],
                sem.at[slot],
            ).start()
            return carry

        # Partial unroll: lets the LLO scheduler pack descriptor-issue bundles
        # (single vector-misc slot) instead of per-row scalar branch overhead.
        jax.lax.fori_loop(0, tile_tokens, body, 0, unroll=8)

    # Prologue: bring tile 0 into slot 0 on the first grid step.
    @pl.when(i == 0)
    def _():
        issue_tile(0, 0)

    # Prefetch the next tile into the other slot BEFORE waiting on this one.
    @pl.when(i + 1 < n_tiles)
    def _():
        issue_tile(i + 1, (i + 1) % 2)

    slot = i % 2
    # Single tile-sized wait: all T row copies signal sem[slot]; the wait
    # decrements by the destination ref's byte count (= full tile), matching
    # the sum of the per-row copies.
    pltpu.make_async_copy(gbuf.at[slot], gbuf.at[slot], sem.at[slot]).wait()

    out_ref[...] = (gbuf[slot].astype(jnp.float32) * jnp.float32(scale)
                    ).astype(out_ref.dtype)


def make_embeddings_forward(lut, *, tile_tokens=256, vocab_onehot_limit=2048,
                            lut_vmem_budget_bytes=None, use_onehot=None):
    """Build forward(x) = Embedding(lut)(x) * sqrt(d_model).

    LUT prep (path choice, one-time d_model padding for the resident-LUT path)
    happens ONCE here, not per forward call.
    """
    vocab, d_model = lut.shape
    scale = math.sqrt(d_model)
    itemsize = lut.dtype.itemsize
    phys_vmem = _physical_vmem_bytes()
    if lut_vmem_budget_bytes is None:
        lut_vmem_budget_bytes = phys_vmem // 4      # generation-aware budget

    dm_pad = _round_up(d_model, 128)
    lut_bytes = vocab * dm_pad * itemsize           # single-buffered resident copy

    if use_onehot is None:
        # Gate on BOTH footprint and vocab size: the (T, vocab) one-hot and
        # the MXU/VPU work scale with vocab, so mid/large vocabularies use the
        # DMA-gather path even when the table would fit VMEM.
        use_onehot = (vocab <= vocab_onehot_limit
                      and lut_bytes <= lut_vmem_budget_bytes)

    if use_onehot:
        # Pad once so every output tile is a lane-dense (T, dm_pad) slab.
        lut_prep = lut if dm_pad == d_model else jnp.pad(
            lut, ((0, 0), (0, dm_pad - d_model)))
    else:
        # Large table stays UNPADDED: padding it would add an O(vocab*d_model)
        # HBM read+write per prep that can dwarf the kernel's own traffic.
        lut_prep = lut

    def forward(x):
        batch, seq = x.shape
        n_tok = batch * seq
        t_tile = min(tile_tokens, _round_up(n_tok, 8))
        n_tok_pad = _round_up(n_tok, t_tile)
        n_tiles = n_tok_pad // t_tile

        # Clamp ids (nn.Embedding precondition: 0 <= id < vocab) -> no OOB DMAs.
        ids = jnp.clip(x.reshape(-1).astype(jnp.int32), 0, vocab - 1)
        ids = jnp.pad(ids, (0, n_tok_pad - n_tok))

        if use_onehot:
            out_bytes = n_tok_pad * dm_pad * itemsize
            needed = (lut_bytes                          # resident LUT (1 buf)
                      + 2 * t_tile * dm_pad * itemsize   # out tile (2 bufs)
                      + 2 * t_tile * 4                   # ids tile (2 bufs)
                      + t_tile * vocab * 4               # one-hot spill
                      + t_tile * dm_pad * 4)             # f32 matmul result
            vmem_limit = int(min(phys_vmem, max(needed + (8 << 20), 16 << 20)))
            cost = pl.CostEstimate(
                flops=2 * n_tok_pad * vocab * dm_pad,
                transcendentals=0,
                bytes_accessed=n_tok_pad * 4 + lut_bytes + out_bytes)
            out_p = pl.pallas_call(
                functools.partial(_onehot_embed_kernel, vocab=vocab, scale=scale),
                grid_spec=pltpu.PrefetchScalarGridSpec(
                    num_scalar_prefetch=0,
                    grid=(n_tiles,),
                    in_specs=[
                        pl.BlockSpec((t_tile, 1), lambda i: (i, 0)),       # ids
                        # Constant index map -> keep ONE resident LUT copy in
                        # VMEM (no pointless double-buffering).
                        pl.BlockSpec((vocab, dm_pad), lambda i: (0, 0),
                                     pipeline_mode=pl.Buffered(1)),
                    ],
                    out_specs=pl.BlockSpec((t_tile, dm_pad), lambda i: (i, 0)),
                ),
                out_shape=jax.ShapeDtypeStruct((n_tok_pad, dm_pad), lut.dtype),
                compiler_params=pltpu.CompilerParams(
                    dimension_semantics=("parallel",),
                    vmem_limit_bytes=vmem_limit),
                cost_estimate=cost,
            )(ids.reshape(n_tok_pad, 1), lut_prep)
            out = out_p[:n_tok, :d_model]
        else:
            out_bytes = n_tok_pad * d_model * itemsize
            needed = (2 * t_tile * d_model * itemsize     # gbuf (2 slots)
                      + 2 * t_tile * d_model * itemsize)  # out tile (2 bufs)
            vmem_limit = int(min(phys_vmem, max(needed + (8 << 20), 16 << 20)))
            cost = pl.CostEstimate(
                flops=n_tok_pad * d_model,
                transcendentals=0,
                bytes_accessed=n_tok_pad * 4
                + n_tok_pad * d_model * itemsize + out_bytes)
            out_p = pl.pallas_call(
                functools.partial(_gather_embed_kernel,
                                  tile_tokens=t_tile, scale=scale),
                grid_spec=pltpu.PrefetchScalarGridSpec(
                    num_scalar_prefetch=1,                       # ids -> SMEM
                    grid=(n_tiles,),
                    in_specs=[pl.BlockSpec(memory_space=pl.ANY)],  # LUT in HBM
                    out_specs=pl.BlockSpec((t_tile, d_model),
                                           lambda i, ids_ref: (i, 0)),
                    scratch_shapes=[
                        pltpu.VMEM((2, t_tile, d_model), lut.dtype),  # 2 slots
                        pltpu.SemaphoreType.DMA((2,)),
                    ],
                ),
                out_shape=jax.ShapeDtypeStruct((n_tok_pad, d_model), lut.dtype),
                compiler_params=pltpu.CompilerParams(
                    # Cross-grid-step prefetch state lives in scratch ->
                    # keep execution sequential on one core.
                    dimension_semantics=("arbitrary",),
                    vmem_limit_bytes=vmem_limit),
                cost_estimate=cost,
            )(ids, lut_prep)
            out = out_p[:n_tok]
        return out.reshape(batch, seq, d_model)

    return jax.jit(forward)


if __name__ == "__main__":
    # Small, deterministic config: vocab=16, d_model=32, batch=2, seq=8
    vocab = 16
    d_model = 32
    batch, seq = 2, 8

    key = jax.random.PRNGKey(0)
    k_lut, k_ids = jax.random.split(key)

    # nn.Embedding default init: weight ~ N(0, 1)
    lut = jax.random.normal(k_lut, (vocab, d_model), dtype=jnp.float32)
    x = jax.random.randint(k_ids, (batch, seq), 0, vocab, dtype=jnp.int32)

    ref = lut[x] * math.sqrt(d_model)

    # Path A (auto-selected for small vocab): resident-LUT one-hot MXU gather.
    fwd_a = make_embeddings_forward(lut)
    out_a = jax.block_until_ready(fwd_a(x))
    assert out_a.shape == (batch, seq, d_model)
    assert jnp.allclose(out_a, ref, atol=1e-6, rtol=1e-6), \
        "resident-LUT path mismatch vs reference"

    # Path B (large-table path, forced): HBM LUT + double-buffered row-gather.
    fwd_b = make_embeddings_forward(lut, use_onehot=False)
    out_b = jax.block_until_ready(fwd_b(x))
    assert out_b.shape == (batch, seq, d_model)
    assert jnp.allclose(out_b, ref, atol=1e-6, rtol=1e-6), \
        "DMA-gather path mismatch vs reference"

    print("KERNEL_OK")
</pallas_src>

<mosaic_0001>
module attributes {stable_mosaic.version = 11 : i64} {
  func.func @_onehot_embed_kernel(%arg0: i32, %arg1: memref<16x1xi32, #tpu.memory_space<vmem>>, %arg2: memref<16x128xf32, #tpu.memory_space<vmem>>, %arg3: memref<16x128xf32, #tpu.memory_space<vmem>>) attributes {dimension_semantics = [#tpu.dimension_semantics<parallel>], iteration_bounds = array<i64: 1>, scalar_prefetch = 0 : i64, scratch_operands = 0 : i64, tpu.core_type = #tpu.core_type<tc>, window_params = [{transform_indices = @transform_0, window_bounds = array<i64: 16, 1>}, {pipeline_mode = #tpu.pipeline_mode<synchronous>, transform_indices = @transform_1, window_bounds = array<i64: 16, 128>}, {transform_indices = @transform_2, window_bounds = array<i64: 16, 128>}]} {
    %c0 = arith.constant 0 : index
    %c0_0 = arith.constant 0 : index
    %0 = vector.load %arg1[%c0, %c0_0] : memref<16x1xi32, #tpu.memory_space<vmem>>, vector<16x1xi32>
    %1 = tpu.iota {dimensions = array<i32: 1>} : vector<16x16xi32>
    %c0_1 = arith.constant 0 : index
    %c0_2 = arith.constant 0 : index
    %2 = vector.load %arg2[%c0_1, %c0_2] : memref<16x128xf32, #tpu.memory_space<vmem>>, vector<16x128xf32>
    %3 = vector.broadcast %0 : vector<16x1xi32> to vector<16x16xi32>
    %4 = arith.cmpi eq, %1, %3 : vector<16x16xi32>
    %cst = arith.constant 1.000000e+00 : f32
    %cst_3 = arith.constant 0.000000e+00 : f32
    %5 = vector.broadcast %cst : f32 to vector<16x16xf32>
    %6 = vector.broadcast %cst_3 : f32 to vector<16x16xf32>
    %7 = arith.select %4, %5, %6 : vector<16x16xi1>, vector<16x16xf32>
    %cst_4 = arith.constant dense<0.000000e+00> : vector<16x128xf32>
    %8 = tpu.matmul %7, %2, %cst_4 {dimension_numbers = #tpu.dot_dimension_numbers<[1], [0], [0], [1], [0, 0, 1, 1], [], []>} : vector<16x16xf32>, vector<16x128xf32>, vector<16x128xf32> -> vector<16x128xf32>
    %cst_5 = arith.constant 5.65685415 : f32
    %9 = vector.broadcast %cst_5 : f32 to vector<16x128xf32>
    %10 = arith.mulf %8, %9 : vector<16x128xf32>
    %c0_6 = arith.constant 0 : index
    %c0_7 = arith.constant 0 : index
    %11 = vector.load %arg3[%c0_6, %c0_7] : memref<16x128xf32, #tpu.memory_space<vmem>>, vector<16x128xf32>
    tpu.vector_store %arg3[%c0_6, %c0_7], %10 {strides = array<i32>} : memref<16x128xf32, #tpu.memory_space<vmem>>, vector<16x128xf32>,
    return
  }
  func.func @transform_0(%arg0: i32) -> (i32, i32) {
    %c0_i32 = arith.constant 0 : i32
    %c0_i32_0 = arith.constant 0 : i32
    return %arg0, %c0_i32 : i32, i32
  }
  func.func @transform_1(%arg0: i32) -> (i32, i32) {
    %c0_i32 = arith.constant 0 : i32
    %c0_i32_0 = arith.constant 0 : i32
    %c0_i32_1 = arith.constant 0 : i32
    return %c0_i32, %c0_i32_0 : i32, i32
  }
  func.func @transform_2(%arg0: i32) -> (i32, i32) {
    %c0_i32 = arith.constant 0 : i32
    %c0_i32_0 = arith.constant 0 : i32
    return %arg0, %c0_i32 : i32, i32
  }
}

</mosaic_0001>

<llo_original>
// kernel: forward.1
$region0: #{forward.1}
  #allocation0 [shape = 'u32[]', space=smem, size = 0x4, offset = 0x4, fixed_abs, tag = 'smem constant byte address 0x4 - core index']
  #allocation1 [shape = 'u32[144,128]{1,0:T(1,128)}', space=vmem, size = 0x12000, scoped, tag = 'internal scratch']
  %s0 = inlined_call_operand.vmem [shape: s32[16,1], index: 0, kind: input, shape index: {}]
  %s1 = inlined_call_operand.vmem [shape: f32[16,128], index: 1, kind: input, shape index: {}]
  %s2 = inlined_call_operand.vmem [shape: f32[16,128], index: 2, kind: output, shape index: {}]
  %s3 = sld [smem:[#allocation0]]
  $region18: #{forward.1} parent=0
    _
  %s5 = ssub.s32 1, %s3
  %s6 = scalar_select 0, %s5, %s3
  // Predicated region
  $region2: #{forward.1} parent=0 // pred_check
    _
  $region3: #{forward.1} parent=0 // pred_check_branch
    %8 = sbr.rel (0) target = $region5
  $region4: #{forward.1} parent=0 // pred_region
    _
  $region5: #{forward.1} parent=0 // pred_fallthru
    _
  // Predicated region
  $region6: #{forward.1} parent=0 // pred_check
    _
  $region7: #{forward.1} parent=0 // pred_check_branch
    %10 = sbr.rel (0) target = $region9
  $region8: #{forward.1} parent=0 // pred_region
    _
  $region9: #{forward.1} parent=0 // pred_fallthru
    _
  %v11 = vld [vmem:[%s0] sm:$0xff]
  %v12 = vld [vmem:[%s0 + $0x8] sm:$0xff]
  %v13 = vlaneseq
  %v14 = vand.u32 %v13, 127
  %v15 = vld [vmem:[%s1] sm:$0xff]
  %v16 = vld [vmem:[%s1 + $0x8] sm:$0xff]
  %17 = vset.pattern.permute.xlu0 0
  %18 = vperm.xlu0 %17, %v11
  %v19 = vpop.permute.xlu0 %18
  %20 = vset.pattern.permute.xlu0 0
  %21 = vperm.xlu0 %20, %v12
  %v22 = vpop.permute.xlu0 %21
  %vm23 = vcmp.eq.s32.totalorder %v14, %v19
  %vm24 = vcmp.eq.s32.totalorder %v14, %v22
  %v25 = vsel %vm23, 1.0, 0.0
  %v26 = vsel %vm24, 1.0, 0.0
  %vm27 = vcmask 130048
  %v29 = vsel %vm27, %v25, 0
  %v32 = vsel %vm27, %v26, 0
  %34 = vmatprep.subr.mxu0 0.0
  %35 = vmatpush1.msra.mxu0 %v15
  %36 = vmatprep.subr.mxu0 0.0
  %37 = vmatpush1.msra.mxu0 %v16
  %38 = vmatprep.subr.mxu0 0.0
  %39 = vmatpush1.msra.mxu0 0.0
  %40 = vmatprep.subr.mxu0 0.0
  %41 = vmatpush1.msra.mxu0 0.0
  %42 = vmatprep.subr.mxu0 0.0
  %43 = vmatpush1.msra.mxu0 0.0
  %44 = vmatprep.subr.mxu0 0.0
  %45 = vmatpush1.msra.mxu0 0.0
  %46 = vmatprep.subr.mxu0 0.0
  %47 = vmatpush1.msra.mxu0 0.0
  %48 = vmatprep.subr.mxu0 0.0
  %49 = vmatpush1.msra.mxu0 0.0
  %50 = vmatprep.subr.mxu0 0.0
  %51 = vmatpush1.msra.mxu0 0.0
  %52 = vmatprep.subr.mxu0 0.0
  %53 = vmatpush1.msra.mxu0 0.0
  %54 = vmatprep.subr.mxu0 0.0
  %55 = vmatpush1.msra.mxu0 0.0
  %56 = vmatprep.subr.mxu0 0.0
  %57 = vmatpush1.msra.mxu0 0.0
  %58 = vmatprep.subr.mxu0 0.0
  %59 = vmatpush1.msra.mxu0 0.0
  %60 = vmatprep.subr.mxu0 0.0
  %61 = vmatpush1.msra.mxu0 0.0
  %62 = vmatprep.subr.mxu0 0.0
  %63 = vmatpush1.msra.mxu0 0.0
  %64 = vmatprep.subr.mxu0 0.0
  %65 = vmatpush1.msra.mxu0 0.0
  %66 = vmatprep.subr.mxu0 0.0
  %67 = vmatpush1.msra.mxu0 0.0
  %68 = vmatprep.subr.mxu0 0.0
  %69 = vmatpush1.msra.mxu0 0.0
  %70 = vmatprep.subr.mxu0 0.0
  %71 = vmatpush1.msra.mxu0 0.0
  %72 = vmatprep.subr.mxu0 0.0
  %73 = vmatpush1.msra.mxu0 0.0
  %74 = vmatprep.subr.mxu0 0.0
  %75 = vmatpush1.msra.mxu0 0.0
  %76 = vmatprep.subr.mxu0 0.0
  %77 = vmatpush1.msra.mxu0 0.0
  %78 = vmatprep.subr.mxu0 0.0
  %79 = vmatpush1.msra.mxu0 0.0
  %80 = vmatprep.subr.mxu0 0.0
  %81 = vmatpush1.msra.mxu0 0.0
  %82 = vmatprep.subr.mxu0 0.0
  %83 = vmatpush1.msra.mxu0 0.0
  %84 = vmatprep.subr.mxu0 0.0
  %85 = vmatpush1.msra.mxu0 0.0
  %86 = vmatprep.subr.mxu0 0.0
  %87 = vmatpush1.msra.mxu0 0.0
  %88 = vmatprep.subr.mxu0 0.0
  %89 = vmatpush1.msra.mxu0 0.0
  %90 = vmatprep.subr.mxu0 0.0
  %91 = vmatpush1.msra.mxu0 0.0
  %92 = vmatprep.subr.mxu0 0.0
  %93 = vmatpush1.msra.mxu0 0.0
  %94 = vmatprep.subr.mxu0 0.0
  %95 = vmatpush1.msra.mxu0 0.0
  %96 = vmatprep.subr.mxu0 0.0
  %97 = vmatpush1.msra.mxu0 0.0
  %98 = vmatprep.mubr.f32.mxu0 0.0
  %99 = vmatmul.mubr.f32.gmra.mrb[0].mxu0 %v29
  %v100 = vpop.f32.mrb[0].mxu0
  %v101 = vadd.f32 0.0, %v100
  %v102 = vpop.f32.mrb[0].mxu0
  %103 = vmatprep.mubr.f32.mxu0 0.0
  %104 = vmatmul.mubr.f32.gmra.mrb[0].mxu0 %v32
  %v105 = vpop.f32.mrb[0].mxu0
  %v106 = vadd.f32 0.0, %v105
  %v107 = vpop.f32.mrb[0].mxu0
  %108 = vdwg.mxu0
  %v109 = vmul.f32 %v101, 5.656854
  %v110 = vmul.f32 %v106, 5.656854
  %111 = vst [vmem:[%s2] sm:$0xff] %v109
  %112 = vst [vmem:[%s2 + $0x8] sm:$0xff] %v110
  // Predicated region
  $region10: #{forward.1} parent=0 // pred_check
    _
  $region11: #{forward.1} parent=0 // pred_check_branch
    %114 = sbr.rel (0) target = $region13
  $region12: #{forward.1} parent=0 // pred_region
    _
  $region13: #{forward.1} parent=0 // pred_fallthru
    _
  // Predicated region
  $region14: #{forward.1} parent=0 // pred_check
    _
  $region15: #{forward.1} parent=0 // pred_check_branch
    %116 = sbr.rel (0) target = $region17
  $region16: #{forward.1} parent=0 // pred_region
    _
  $region17: #{forward.1} parent=0 // pred_fallthru
    _

</llo_original>
